<compile_context>
chip_gen: v5e
topology: v5e:2x2
jax: 0.10.0
libtpu: 0.0.40
codegen_flags: <defaults>
</compile_context>

<pallas_src>
import jax
import jax.numpy as jnp
from jax import lax
from jax.experimental import pallas as pl
from jax.experimental.pallas import tpu as pltpu


def _mlp_kernel(x_ref, w_ref, b_ref, o_ref):
    """x_ref: [tm, dim] f32, w_ref: [layers, dim, dim] bf16 (pre-transposed),
    b_ref: [layers, dim] f32, o_ref: [tm, dim] f32."""
    layers = w_ref.shape[0]  # static

    def layer_body(l, act_bf16):
        # MXU matmul: bf16 x bf16 operands, f32 accumulation.
        y = jnp.dot(act_bf16, w_ref[l], preferred_element_type=jnp.float32)
        y = y + b_ref[l][None, :]           # lane-dense bias row, broadcast over rows
        y = jnp.maximum(y, 0.0)             # ReLU (f32 on VPU)
        return y.astype(jnp.bfloat16)       # carry activation in bf16

    act = lax.fori_loop(
        0, layers, layer_body, x_ref[...].astype(jnp.bfloat16), unroll=True
    )
    o_ref[...] = act.astype(o_ref.dtype)


def dummy_model_forward(x, weights_t, biases, *, tm=128):
    """x: [batch, dim] f32.
    weights_t: [layers, dim, dim] bf16, pre-transposed (weights_t[l] = W_l.T),
    so the kernel computes y = x @ W_l.T + b_l per layer.
    biases: [layers, dim] f32."""
    batch, dim = x.shape
    layers = weights_t.shape[0]

    # Pad M to a multiple of the MXU-filling tile so the matmul rows are dense.
    m_pad = pl.cdiv(batch, tm) * tm
    x_p = jnp.pad(x, ((0, m_pad - batch), (0, 0))) if m_pad != batch else x
    n_m = m_pad // tm

    cost = pl.CostEstimate(
        flops=2 * m_pad * dim * dim * layers,
        transcendentals=0,
        bytes_accessed=(
            n_m * weights_t.size * weights_t.dtype.itemsize   # weight stack per M tile
            + n_m * biases.size * biases.dtype.itemsize        # bias stack per M tile
            + x_p.size * x_p.dtype.itemsize                    # activations in
            + m_pad * dim * 4                                  # activations out
        ),
    )

    out = pl.pallas_call(
        _mlp_kernel,
        out_shape=jax.ShapeDtypeStruct((m_pad, dim), x.dtype),
        grid=(n_m,),
        in_specs=[
            pl.BlockSpec((tm, dim), lambda i: (i, 0)),            # activation M tile
            pl.BlockSpec((layers, dim, dim), lambda i: (0, 0, 0)),  # full weight stack
            pl.BlockSpec((layers, dim), lambda i: (0, 0)),          # flat bias stack
        ],
        out_specs=pl.BlockSpec((tm, dim), lambda i: (i, 0)),
        compiler_params=pltpu.CompilerParams(
            dimension_semantics=("parallel",),  # M tiles independent -> megacore on v7x
        ),
        cost_estimate=cost,
    )(x_p, weights_t, biases)

    return out[:batch]


def _reference(x, weights_t_bf16, biases):
    """Matches kernel precision: bf16 operands + bf16 inter-layer activations,
    f32 accumulation, f32 bias/ReLU."""
    act = x.astype(jnp.bfloat16)
    for l in range(weights_t_bf16.shape[0]):
        y = jnp.dot(act, weights_t_bf16[l], preferred_element_type=jnp.float32)
        y = y + biases[l]
        act = jnp.maximum(y, 0.0).astype(jnp.bfloat16)
    return act.astype(jnp.float32)


if __name__ == "__main__":
    layers = 3
    dim = 128
    batch = 8

    key = jax.random.PRNGKey(0)
    kx, kw, kb = jax.random.split(key, 3)

    x = jax.random.normal(kx, (batch, dim), dtype=jnp.float32)

    # Deterministic parameter init (PyTorch-Linear-like uniform(-1/sqrt(dim), 1/sqrt(dim))).
    bound = 1.0 / jnp.sqrt(jnp.float32(dim))
    # PyTorch stores W as [out, in]; kernel wants W.T, so generate directly as [in, out].
    weights_t_f32 = jax.random.uniform(
        kw, (layers, dim, dim), dtype=jnp.float32, minval=-bound, maxval=bound
    )
    weights_t = weights_t_f32.astype(jnp.bfloat16)  # weight-streaming in bf16
    biases = jax.random.uniform(
        kb, (layers, dim), dtype=jnp.float32, minval=-bound, maxval=bound
    )

    out = dummy_model_forward(x, weights_t, biases)
    out = jax.block_until_ready(out)

    ref = _reference(x, weights_t, biases)
    assert out.shape == (batch, dim)
    assert jnp.allclose(out, ref, atol=2e-2, rtol=2e-2)

    print("KERNEL_OK")
</pallas_src>

<mosaic_0001>
module attributes {stable_mosaic.version = 11 : i64} {
  func.func @_mlp_kernel(%arg0: i32, %arg1: memref<128x128xf32, #tpu.memory_space<vmem>>, %arg2: memref<3x128x128xbf16, #tpu.memory_space<vmem>>, %arg3: memref<3x128xf32, #tpu.memory_space<vmem>>, %arg4: memref<128x128xf32, #tpu.memory_space<vmem>>) attributes {dimension_semantics = [#tpu.dimension_semantics<parallel>], iteration_bounds = array<i64: 1>, scalar_prefetch = 0 : i64, scratch_operands = 0 : i64, tpu.core_type = #tpu.core_type<tc>, window_params = [{transform_indices = @transform_0, window_bounds = array<i64: 128, 128>}, {pipeline_mode = #tpu.pipeline_mode<synchronous>, transform_indices = @transform_1, window_bounds = array<i64: 3, 128, 128>}, {pipeline_mode = #tpu.pipeline_mode<synchronous>, transform_indices = @transform_2, window_bounds = array<i64: 3, 128>}, {transform_indices = @transform_3, window_bounds = array<i64: 128, 128>}]} {
    %c0 = arith.constant 0 : index
    %c0_0 = arith.constant 0 : index
    %0 = vector.load %arg1[%c0, %c0_0] : memref<128x128xf32, #tpu.memory_space<vmem>>, vector<128x128xf32>
    %1 = arith.truncf %0 : vector<128x128xf32> to vector<128x128xbf16>
    %c0_i32 = arith.constant 0 : i32
    %2 = arith.index_cast %c0_i32 : i32 to index
    %c0_1 = arith.constant 0 : index
    %c0_2 = arith.constant 0 : index
    %3 = vector.load %arg2[%2, %c0_1, %c0_2] : memref<3x128x128xbf16, #tpu.memory_space<vmem>>, vector<1x128x128xbf16>
    %4 = vector.shape_cast %3 : vector<1x128x128xbf16> to vector<128x128xbf16>
    %cst = arith.constant dense<0.000000e+00> : vector<128x128xf32>
    %5 = tpu.matmul %1, %4, %cst {dimension_numbers = #tpu.dot_dimension_numbers<[1], [0], [0], [1], [0, 0, 1, 1], [], []>} : vector<128x128xbf16>, vector<128x128xbf16>, vector<128x128xf32> -> vector<128x128xf32>
    %6 = arith.index_cast %c0_i32 : i32 to index
    %c0_3 = arith.constant 0 : index
    %7 = vector.load %arg3[%6, %c0_3] : memref<3x128xf32, #tpu.memory_space<vmem>>, vector<1x128xf32>
    %8 = vector.shape_cast %7 : vector<1x128xf32> to vector<128xf32>
    %9 = vector.shape_cast %8 : vector<128xf32> to vector<1x128xf32>
    %10 = vector.broadcast %9 : vector<1x128xf32> to vector<128x128xf32>
    %11 = arith.addf %5, %10 : vector<128x128xf32>
    %cst_4 = arith.constant 0.000000e+00 : f32
    %12 = vector.broadcast %cst_4 : f32 to vector<128x128xf32>
    %13 = arith.maximumf %11, %12 : vector<128x128xf32>
    %14 = arith.truncf %13 : vector<128x128xf32> to vector<128x128xbf16>
    %c1_i32 = arith.constant 1 : i32
    %15 = arith.index_cast %c1_i32 : i32 to index
    %c0_5 = arith.constant 0 : index
    %c0_6 = arith.constant 0 : index
    %16 = vector.load %arg2[%15, %c0_5, %c0_6] : memref<3x128x128xbf16, #tpu.memory_space<vmem>>, vector<1x128x128xbf16>
    %17 = vector.shape_cast %16 : vector<1x128x128xbf16> to vector<128x128xbf16>
    %cst_7 = arith.constant dense<0.000000e+00> : vector<128x128xf32>
    %18 = tpu.matmul %14, %17, %cst_7 {dimension_numbers = #tpu.dot_dimension_numbers<[1], [0], [0], [1], [0, 0, 1, 1], [], []>} : vector<128x128xbf16>, vector<128x128xbf16>, vector<128x128xf32> -> vector<128x128xf32>
    %19 = arith.index_cast %c1_i32 : i32 to index
    %c0_8 = arith.constant 0 : index
    %20 = vector.load %arg3[%19, %c0_8] : memref<3x128xf32, #tpu.memory_space<vmem>>, vector<1x128xf32>
    %21 = vector.shape_cast %20 : vector<1x128xf32> to vector<128xf32>
    %22 = vector.shape_cast %21 : vector<128xf32> to vector<1x128xf32>
    %23 = vector.broadcast %22 : vector<1x128xf32> to vector<128x128xf32>
    %24 = arith.addf %18, %23 : vector<128x128xf32>
    %cst_9 = arith.constant 0.000000e+00 : f32
    %25 = vector.broadcast %cst_9 : f32 to vector<128x128xf32>
    %26 = arith.maximumf %24, %25 : vector<128x128xf32>
    %27 = arith.truncf %26 : vector<128x128xf32> to vector<128x128xbf16>
    %c2_i32 = arith.constant 2 : i32
    %28 = arith.index_cast %c2_i32 : i32 to index
    %c0_10 = arith.constant 0 : index
    %c0_11 = arith.constant 0 : index
    %29 = vector.load %arg2[%28, %c0_10, %c0_11] : memref<3x128x128xbf16, #tpu.memory_space<vmem>>, vector<1x128x128xbf16>
    %30 = vector.shape_cast %29 : vector<1x128x128xbf16> to vector<128x128xbf16>
    %cst_12 = arith.constant dense<0.000000e+00> : vector<128x128xf32>
    %31 = tpu.matmul %27, %30, %cst_12 {dimension_numbers = #tpu.dot_dimension_numbers<[1], [0], [0], [1], [0, 0, 1, 1], [], []>} : vector<128x128xbf16>, vector<128x128xbf16>, vector<128x128xf32> -> vector<128x128xf32>
    %32 = arith.index_cast %c2_i32 : i32 to index
    %c0_13 = arith.constant 0 : index
    %33 = vector.load %arg3[%32, %c0_13] : memref<3x128xf32, #tpu.memory_space<vmem>>, vector<1x128xf32>
    %34 = vector.shape_cast %33 : vector<1x128xf32> to vector<128xf32>
    %35 = vector.shape_cast %34 : vector<128xf32> to vector<1x128xf32>
    %36 = vector.broadcast %35 : vector<1x128xf32> to vector<128x128xf32>
    %37 = arith.addf %31, %36 : vector<128x128xf32>
    %cst_14 = arith.constant 0.000000e+00 : f32
    %38 = vector.broadcast %cst_14 : f32 to vector<128x128xf32>
    %39 = arith.maximumf %37, %38 : vector<128x128xf32>
    %40 = arith.truncf %39 : vector<128x128xf32> to vector<128x128xbf16>
    %c3_i32 = arith.constant 3 : i32
    %41 = arith.extf %40 : vector<128x128xbf16> to vector<128x128xf32>
    %c0_15 = arith.constant 0 : index
    %c0_16 = arith.constant 0 : index
    %42 = vector.load %arg4[%c0_15, %c0_16] : memref<128x128xf32, #tpu.memory_space<vmem>>, vector<128x128xf32>
    tpu.vector_store %arg4[%c0_15, %c0_16], %41 {strides = array<i32>} : memref<128x128xf32, #tpu.memory_space<vmem>>, vector<128x128xf32>,
    return
  }
  func.func @transform_0(%arg0: i32) -> (i32, i32) {
    %c0_i32 = arith.constant 0 : i32
    %c0_i32_0 = arith.constant 0 : i32
    return %arg0, %c0_i32 : i32, i32
  }
  func.func @transform_1(%arg0: i32) -> (i32, i32, i32) {
    %c0_i32 = arith.constant 0 : i32
    %c0_i32_0 = arith.constant 0 : i32
    %c0_i32_1 = arith.constant 0 : i32
    %c0_i32_2 = arith.constant 0 : i32
    return %c0_i32, %c0_i32_0, %c0_i32_1 : i32, i32, i32
  }
  func.func @transform_2(%arg0: i32) -> (i32, i32) {
    %c0_i32 = arith.constant 0 : i32
    %c0_i32_0 = arith.constant 0 : i32
    %c0_i32_1 = arith.constant 0 : i32
    return %c0_i32, %c0_i32_0 : i32, i32
  }
  func.func @transform_3(%arg0: i32) -> (i32, i32) {
    %c0_i32 = arith.constant 0 : i32
    %c0_i32_0 = arith.constant 0 : i32
    return %arg0, %c0_i32 : i32, i32
  }
}

</mosaic_0001>

<llo_original>
// kernel: tpu_custom_call.1
$region0: #{tpu_custom_call.1}
  #allocation0 [shape = 'u32[]', space=smem, size = 0x4, offset = 0x4, fixed_abs, tag = 'smem constant byte address 0x4 - core index']
  #allocation1 [shape = 'u32[72,128]{1,0:T(1,128)}', space=vmem, size = 0x9000, scoped, tag = 'internal scratch']
  %s0 = inlined_call_operand.hbm [shape: f32[128,128], index: 0, kind: input, shape index: {}]
  %s1 = inlined_call_operand.hbm [shape: bf16[3,128,128], index: 1, kind: input, shape index: {}]
  %s2 = inlined_call_operand.hbm [shape: f32[3,128], index: 2, kind: input, shape index: {}]
  %s3 = inlined_call_operand.hbm [shape: f32[128,128], index: 3, kind: output, shape index: {}]
  %s4 = sld [smem:[#allocation0]]
  $region34: #{tpu_custom_call.1} parent=0
    _
  %s6 = ssub.s32 1, %s4
  %s7 = scalar_select 0, %s6, %s4
  $region1: #{tpu_custom_call.1} parent=0
    #allocation2 [shape = 'u8[65536]{0}', space=vmem, size = 0x10000, scoped, tag = 'input window, operand 0, single buffered']
    #allocation3 [shape = 's32[1]{0}', space=sflag, size = 0x4, scoped, tag = 'scoped memory for tpu_custom_call.1']
    #allocation4 [shape = 's32[1]{0}', space=sflag, size = 0x4, scoped, tag = 'scoped memory for tpu_custom_call.1']
    #allocation5 [shape = 'u8[98304]{0}', space=vmem, size = 0x18000, scoped, tag = 'input window, operand 1, single buffered']
    #allocation6 [shape = 's32[1]{0}', space=sflag, size = 0x4, scoped, tag = 'scoped memory for tpu_custom_call.1']
    #allocation7 [shape = 'u8[2048]{0}', space=vmem, size = 0x800, scoped, tag = 'input window, operand 2, single buffered']
    #allocation8 [shape = 'u8[65536]{0}', space=vmem, size = 0x10000, scoped, tag = 'output window, operand 0, single buffered']
    %8 = vsyncpa [#allocation3], 0
    %9 = vsyncpa [#allocation6], 0
    %10 = vsyncpa [#allocation4], 0
    // Predicated region
    $region2: #{tpu_custom_call.1} parent=1 // pred_check
      _
    $region3: #{tpu_custom_call.1} parent=1 // pred_check_branch
      %12 = sbr.rel (0) target = $region5
    $region4: #{tpu_custom_call.1} parent=1 // pred_region
      %14 = vsyncadd [#allocation3], 0
      %s15 = sshll.u32 %s0, 4
      %s16 = int_to_ptr.hbm [resolvable:$true] %s15
      %s17 = sshll.u32 [#allocation2], 4
      %s18 = int_to_ptr.vmem [resolvable:$true] %s17
      %23 = dma.hbm_to_vmem [thread:$0]  %s16, 2048, %s18, [#allocation3], 128, 128, 8
    $region5: #{tpu_custom_call.1} parent=1 // pred_fallthru
      _
    // Predicated region
    $region6: #{tpu_custom_call.1} parent=1 // pred_check
      _
    $region7: #{tpu_custom_call.1} parent=1 // pred_check_branch
      %25 = sbr.rel (0) target = $region9
    $region8: #{tpu_custom_call.1} parent=1 // pred_region
      %27 = vsyncadd [#allocation6], 0
      %s28 = sshll.u32 %s1, 4
      %s29 = int_to_ptr.hbm [resolvable:$true] %s28
      %s30 = sshll.u32 [#allocation5], 4
      %s31 = int_to_ptr.vmem [resolvable:$true] %s30
      %36 = dma.hbm_to_vmem [thread:$0]  %s29, 3072, %s31, [#allocation6], 64, 64, 4
    $region9: #{tpu_custom_call.1} parent=1 // pred_fallthru
      _
    // Predicated region
    $region10: #{tpu_custom_call.1} parent=1 // pred_check
      _
    $region11: #{tpu_custom_call.1} parent=1 // pred_check_branch
      %38 = sbr.rel (0) target = $region13
    $region12: #{tpu_custom_call.1} parent=1 // pred_region
      %40 = vsyncadd [#allocation6], 0
      %s42 = sshll.u32 %s2, 4
      %s43 = int_to_ptr.hbm [resolvable:$true] %s42
      %s44 = sshll.u32 [#allocation7], 4
      %s45 = int_to_ptr.vmem [resolvable:$true] %s44
      %47 = dma.hbm_to_vmem [thread:$0]  %s43, 64, %s45, [#allocation6]
    $region13: #{tpu_custom_call.1} parent=1 // pred_fallthru
      _
    // Predicated region
    $region14: #{tpu_custom_call.1} parent=1 // pred_check
      _
    $region15: #{tpu_custom_call.1} parent=1 // pred_check_branch
      %49 = sbr.rel (0) target = $region17
    $region16: #{tpu_custom_call.1} parent=1 // pred_region
      %51 = dma.done [#allocation3], 2048
    $region17: #{tpu_custom_call.1} parent=1 // pred_fallthru
      _
    // Predicated region
    $region18: #{tpu_custom_call.1} parent=1 // pred_check
      _
    $region19: #{tpu_custom_call.1} parent=1 // pred_check_branch
      %53 = sbr.rel (0) target = $region21
    $region20: #{tpu_custom_call.1} parent=1 // pred_region
      %55 = dma.done [#allocation6], 3072
    $region21: #{tpu_custom_call.1} parent=1 // pred_fallthru
      _
    // Predicated region
    $region22: #{tpu_custom_call.1} parent=1 // pred_check
      _
    $region23: #{tpu_custom_call.1} parent=1 // pred_check_branch
      %57 = sbr.rel (0) target = $region25
    $region24: #{tpu_custom_call.1} parent=1 // pred_region
      %59 = dma.done [#allocation6], 64
    $region25: #{tpu_custom_call.1} parent=1 // pred_fallthru
      _
    %v60 = vld [vmem:[#allocation2] sm:$0xff]
    %v61 = vld [vmem:[#allocation2 + $0x8] sm:$0xff]
    %v62 = vld [vmem:[#allocation2 + $0x10] sm:$0xff]
    %v63 = vld [vmem:[#allocation2 + $0x18] sm:$0xff]
    %v64 = vld [vmem:[#allocation2 + $0x20] sm:$0xff]
    %v65 = vld [vmem:[#allocation2 + $0x28] sm:$0xff]
    %v66 = vld [vmem:[#allocation2 + $0x30] sm:$0xff]
    %v67 = vld [vmem:[#allocation2 + $0x38] sm:$0xff]
    %v68 = vld [vmem:[#allocation2 + $0x40] sm:$0xff]
    %v69 = vld [vmem:[#allocation2 + $0x48] sm:$0xff]
    %v70 = vld [vmem:[#allocation2 + $0x50] sm:$0xff]
    %v71 = vld [vmem:[#allocation2 + $0x58] sm:$0xff]
    %v72 = vld [vmem:[#allocation2 + $0x60] sm:$0xff]
    %v73 = vld [vmem:[#allocation2 + $0x68] sm:$0xff]
    %v74 = vld [vmem:[#allocation2 + $0x70] sm:$0xff]
    %v75 = vld [vmem:[#allocation2 + $0x78] sm:$0xff]
    %v76 = vpack.c.bf16 %v61, %v60
    %v77 = vpack.c.bf16 %v63, %v62
    %v78 = vpack.c.bf16 %v65, %v64
    %v79 = vpack.c.bf16 %v67, %v66
    %v80 = vpack.c.bf16 %v69, %v68
    %v81 = vpack.c.bf16 %v71, %v70
    %v82 = vpack.c.bf16 %v73, %v72
    %v83 = vpack.c.bf16 %v75, %v74
    %v84 = vld [vmem:[#allocation5] sm:$0xf]
    %v85 = vld [vmem:[#allocation5 + $0x4] sm:$0xf]
    %v86 = vld [vmem:[#allocation5 + $0x8] sm:$0xf]
    %v87 = vld [vmem:[#allocation5 + $0xc] sm:$0xf]
    %v88 = vld [vmem:[#allocation5 + $0x10] sm:$0xf]
    %v89 = vld [vmem:[#allocation5 + $0x14] sm:$0xf]
    %v90 = vld [vmem:[#allocation5 + $0x18] sm:$0xf]
    %v91 = vld [vmem:[#allocation5 + $0x1c] sm:$0xf]
    %v92 = vld [vmem:[#allocation5 + $0x20] sm:$0xf]
    %v93 = vld [vmem:[#allocation5 + $0x24] sm:$0xf]
    %v94 = vld [vmem:[#allocation5 + $0x28] sm:$0xf]
    %v95 = vld [vmem:[#allocation5 + $0x2c] sm:$0xf]
    %v96 = vld [vmem:[#allocation5 + $0x30] sm:$0xf]
    %v97 = vld [vmem:[#allocation5 + $0x34] sm:$0xf]
    %v98 = vld [vmem:[#allocation5 + $0x38] sm:$0xf]
    %v99 = vld [vmem:[#allocation5 + $0x3c] sm:$0xf]
    %v100 = vld [vmem:[#allocation7] sm:$0x1]
    %v101 = vperm.slane %v100, 0
    %v118 = vunpack.c.l.b16 %v84
    %v119 = vunpack.c.l.b16 %v85
    %v120 = vunpack.c.l.b16 %v86
    %v121 = vunpack.c.l.b16 %v87
    %v122 = vunpack.c.l.b16 %v88
    %v123 = vunpack.c.l.b16 %v89
    %v124 = vunpack.c.l.b16 %v90
    %v125 = vunpack.c.l.b16 %v91
    %v126 = vunpack.c.l.b16 %v92
    %v127 = vunpack.c.l.b16 %v93
    %v128 = vunpack.c.l.b16 %v94
    %v129 = vunpack.c.l.b16 %v95
    %v130 = vunpack.c.l.b16 %v96
    %v131 = vunpack.c.l.b16 %v97
    %v132 = vunpack.c.l.b16 %v98
    %v133 = vunpack.c.l.b16 %v99
    %v134 = vpack.c.b16 %v119, %v118
    %v135 = vpack.c.b16 %v121, %v120
    %v136 = vpack.c.b16 %v123, %v122
    %v137 = vpack.c.b16 %v125, %v124
    %v138 = vpack.c.b16 %v127, %v126
    %v139 = vpack.c.b16 %v129, %v128
    %v140 = vpack.c.b16 %v131, %v130
    %v141 = vpack.c.b16 %v133, %v132
    %150 = vmatpush.bf16.msra.mxu0 %v141
    %151 = vmatpush.bf16.msra.mxu0 %v140
    %152 = vmatpush.bf16.msra.mxu0 %v139
    %153 = vmatpush.bf16.msra.mxu0 %v138
    %154 = vmatpush.bf16.msra.mxu0 %v137
    %155 = vmatpush.bf16.msra.mxu0 %v136
    %156 = vmatpush.bf16.msra.mxu0 %v135
    %157 = vmatpush.bf16.msra.mxu0 %v134
    %158 = vmatmul.bf16.gmra.mxu0 %v76
    %v159 = vpop.f32.mrf.mxu0
    %v160 = vadd.f32 %v101, %v159
    %v161 = vpop.f32.mrf.mxu0
    %v162 = vadd.f32 %v101, %v161
    %163 = vmatmul.bf16.gmra.mxu0 %v77
    %v164 = vpop.f32.mrf.mxu0
    %v165 = vadd.f32 %v101, %v164
    %v166 = vpop.f32.mrf.mxu0
    %v167 = vadd.f32 %v101, %v166
    %168 = vmatmul.bf16.gmra.mxu0 %v78
    %v169 = vpop.f32.mrf.mxu0
    %v170 = vadd.f32 %v101, %v169
    %v171 = vpop.f32.mrf.mxu0
    %v172 = vadd.f32 %v101, %v171
    %173 = vmatmul.bf16.gmra.mxu0 %v79
    %v174 = vpop.f32.mrf.mxu0
    %v175 = vadd.f32 %v101, %v174
    %v176 = vpop.f32.mrf.mxu0
    %v177 = vadd.f32 %v101, %v176
    %178 = vmatmul.bf16.gmra.mxu0 %v80
    %v179 = vpop.f32.mrf.mxu0
    %v180 = vadd.f32 %v101, %v179
    %v181 = vpop.f32.mrf.mxu0
    %v182 = vadd.f32 %v101, %v181
    %183 = vmatmul.bf16.gmra.mxu0 %v81
    %v184 = vpop.f32.mrf.mxu0
    %v185 = vadd.f32 %v101, %v184
    %v186 = vpop.f32.mrf.mxu0
    %v187 = vadd.f32 %v101, %v186
    %188 = vmatmul.bf16.gmra.mxu0 %v82
    %v189 = vpop.f32.mrf.mxu0
    %v190 = vadd.f32 %v101, %v189
    %v191 = vpop.f32.mrf.mxu0
    %v192 = vadd.f32 %v101, %v191
    %193 = vmatmul.bf16.gmra.mxu0 %v83
    %v194 = vpop.f32.mrf.mxu0
    %v195 = vadd.f32 %v101, %v194
    %v196 = vpop.f32.mrf.mxu0
    %v197 = vadd.f32 %v101, %v196
    %198 = vdwg.mxu0
    %v199 = vmax.f32 %v160, 0.0
    %v200 = vmax.f32 %v162, 0.0
    %v201 = vmax.f32 %v165, 0.0
    %v202 = vmax.f32 %v167, 0.0
    %v203 = vmax.f32 %v170, 0.0
    %v204 = vmax.f32 %v172, 0.0
    %v205 = vmax.f32 %v175, 0.0
    %v206 = vmax.f32 %v177, 0.0
    %v207 = vmax.f32 %v180, 0.0
    %v208 = vmax.f32 %v182, 0.0
    %v209 = vmax.f32 %v185, 0.0
    %v210 = vmax.f32 %v187, 0.0
    %v211 = vmax.f32 %v190, 0.0
    %v212 = vmax.f32 %v192, 0.0
    %v213 = vmax.f32 %v195, 0.0
    %v214 = vmax.f32 %v197, 0.0
    %v215 = vpack.c.bf16 %v200, %v199
    %v216 = vpack.c.bf16 %v202, %v201
    %v217 = vpack.c.bf16 %v204, %v203
    %v218 = vpack.c.bf16 %v206, %v205
    %v219 = vpack.c.bf16 %v208, %v207
    %v220 = vpack.c.bf16 %v210, %v209
    %v221 = vpack.c.bf16 %v212, %v211
    %v222 = vpack.c.bf16 %v214, %v213
    %s223 = scalar_lea.vmem [#allocation5], 64
    %v224 = vld [vmem:[%s223] sm:$0xf]
    %v225 = vld [vmem:[%s223 + $0x4] sm:$0xf]
    %v226 = vld [vmem:[%s223 + $0x8] sm:$0xf]
    %v227 = vld [vmem:[%s223 + $0xc] sm:$0xf]
    %v228 = vld [vmem:[%s223 + $0x10] sm:$0xf]
    %v229 = vld [vmem:[%s223 + $0x14] sm:$0xf]
    %v230 = vld [vmem:[%s223 + $0x18] sm:$0xf]
    %v231 = vld [vmem:[%s223 + $0x1c] sm:$0xf]
    %v232 = vld [vmem:[%s223 + $0x20] sm:$0xf]
    %v233 = vld [vmem:[%s223 + $0x24] sm:$0xf]
    %v234 = vld [vmem:[%s223 + $0x28] sm:$0xf]
    %v235 = vld [vmem:[%s223 + $0x2c] sm:$0xf]
    %v236 = vld [vmem:[%s223 + $0x30] sm:$0xf]
    %v237 = vld [vmem:[%s223 + $0x34] sm:$0xf]
    %v238 = vld [vmem:[%s223 + $0x38] sm:$0xf]
    %v239 = vld [vmem:[%s223 + $0x3c] sm:$0xf]
    %v240 = vld [vmem:[#allocation7 + $0x1] sm:$0x1]
    %v241 = vperm.slane %v240, 0
    %v258 = vunpack.c.l.b16 %v224
    %v259 = vunpack.c.l.b16 %v225
    %v260 = vunpack.c.l.b16 %v226
    %v261 = vunpack.c.l.b16 %v227
    %v262 = vunpack.c.l.b16 %v228
    %v263 = vunpack.c.l.b16 %v229
    %v264 = vunpack.c.l.b16 %v230
    %v265 = vunpack.c.l.b16 %v231
    %v266 = vunpack.c.l.b16 %v232
    %v267 = vunpack.c.l.b16 %v233
    %v268 = vunpack.c.l.b16 %v234
    %v269 = vunpack.c.l.b16 %v235
    %v270 = vunpack.c.l.b16 %v236
    %v271 = vunpack.c.l.b16 %v237
    %v272 = vunpack.c.l.b16 %v238
    %v273 = vunpack.c.l.b16 %v239
    %v274 = vpack.c.b16 %v259, %v258
    %v275 = vpack.c.b16 %v261, %v260
    %v276 = vpack.c.b16 %v263, %v262
    %v277 = vpack.c.b16 %v265, %v264
    %v278 = vpack.c.b16 %v267, %v266
    %v279 = vpack.c.b16 %v269, %v268
    %v280 = vpack.c.b16 %v271, %v270
    %v281 = vpack.c.b16 %v273, %v272
    %290 = vmatpush.bf16.msra.mxu0 %v281
    %291 = vmatpush.bf16.msra.mxu0 %v280
    %292 = vmatpush.bf16.msra.mxu0 %v279
    %293 = vmatpush.bf16.msra.mxu0 %v278
    %294 = vmatpush.bf16.msra.mxu0 %v277
    %295 = vmatpush.bf16.msra.mxu0 %v276
    %296 = vmatpush.bf16.msra.mxu0 %v275
    %297 = vmatpush.bf16.msra.mxu0 %v274
    %298 = vmatmul.bf16.gmra.mxu0 %v215
    %v299 = vpop.f32.mrf.mxu0
    %v300 = vadd.f32 %v241, %v299
    %v301 = vpop.f32.mrf.mxu0
    %v302 = vadd.f32 %v241, %v301
    %303 = vmatmul.bf16.gmra.mxu0 %v216
    %v304 = vpop.f32.mrf.mxu0
    %v305 = vadd.f32 %v241, %v304
    %v306 = vpop.f32.mrf.mxu0
    %v307 = vadd.f32 %v241, %v306
    %308 = vmatmul.bf16.gmra.mxu0 %v217
    %v309 = vpop.f32.mrf.mxu0
    %v310 = vadd.f32 %v241, %v309
    %v311 = vpop.f32.mrf.mxu0
    %v312 = vadd.f32 %v241, %v311
    %313 = vmatmul.bf16.gmra.mxu0 %v218
    %v314 = vpop.f32.mrf.mxu0
    %v315 = vadd.f32 %v241, %v314
    %v316 = vpop.f32.mrf.mxu0
    %v317 = vadd.f32 %v241, %v316
    %318 = vmatmul.bf16.gmra.mxu0 %v219
    %v319 = vpop.f32.mrf.mxu0
    %v320 = vadd.f32 %v241, %v319
    %v321 = vpop.f32.mrf.mxu0
    %v322 = vadd.f32 %v241, %v321
    %323 = vmatmul.bf16.gmra.mxu0 %v220
    %v324 = vpop.f32.mrf.mxu0
    %v325 = vadd.f32 %v241, %v324
    %v326 = vpop.f32.mrf.mxu0
    %v327 = vadd.f32 %v241, %v326
    %328 = vmatmul.bf16.gmra.mxu0 %v221
    %v329 = vpop.f32.mrf.mxu0
    %v330 = vadd.f32 %v241, %v329
    %v331 = vpop.f32.mrf.mxu0
    %v332 = vadd.f32 %v241, %v331
    %333 = vmatmul.bf16.gmra.mxu0 %v222
    %v334 = vpop.f32.mrf.mxu0
    %v335 = vadd.f32 %v241, %v334
    %v336 = vpop.f32.mrf.mxu0
    %v337 = vadd.f32 %v241, %v336
    %338 = vdwg.mxu0
    %v339 = vmax.f32 %v300, 0.0
    %v340 = vmax.f32 %v302, 0.0
    %v341 = vmax.f32 %v305, 0.0
    %v342 = vmax.f32 %v307, 0.0
    %v343 = vmax.f32 %v310, 0.0
    %v344 = vmax.f32 %v312, 0.0
    %v345 = vmax.f32 %v315, 0.0
    %v346 = vmax.f32 %v317, 0.0
    %v347 = vmax.f32 %v320, 0.0
    %v348 = vmax.f32 %v322, 0.0
    %v349 = vmax.f32 %v325, 0.0
    %v350 = vmax.f32 %v327, 0.0
    %v351 = vmax.f32 %v330, 0.0
    %v352 = vmax.f32 %v332, 0.0
    %v353 = vmax.f32 %v335, 0.0
    %v354 = vmax.f32 %v337, 0.0
    %v355 = vpack.c.bf16 %v340, %v339
    %v356 = vpack.c.bf16 %v342, %v341
    %v357 = vpack.c.bf16 %v344, %v343
    %v358 = vpack.c.bf16 %v346, %v345
    %v359 = vpack.c.bf16 %v348, %v347
    %v360 = vpack.c.bf16 %v350, %v349
    %v361 = vpack.c.bf16 %v352, %v351
    %v362 = vpack.c.bf16 %v354, %v353
    %s363 = scalar_lea.vmem [#allocation5], 128
    %v364 = vld [vmem:[%s363] sm:$0xf]
    %v365 = vld [vmem:[%s363 + $0x4] sm:$0xf]
    %v366 = vld [vmem:[%s363 + $0x8] sm:$0xf]
    %v367 = vld [vmem:[%s363 + $0xc] sm:$0xf]
    %v368 = vld [vmem:[%s363 + $0x10] sm:$0xf]
    %v369 = vld [vmem:[%s363 + $0x14] sm:$0xf]
    %v370 = vld [vmem:[%s363 + $0x18] sm:$0xf]
    %v371 = vld [vmem:[%s363 + $0x1c] sm:$0xf]
    %v372 = vld [vmem:[%s363 + $0x20] sm:$0xf]
    %v373 = vld [vmem:[%s363 + $0x24] sm:$0xf]
    %v374 = vld [vmem:[%s363 + $0x28] sm:$0xf]
    %v375 = vld [vmem:[%s363 + $0x2c] sm:$0xf]
    %v376 = vld [vmem:[%s363 + $0x30] sm:$0xf]
    %v377 = vld [vmem:[%s363 + $0x34] sm:$0xf]
    %v378 = vld [vmem:[%s363 + $0x38] sm:$0xf]
    %v379 = vld [vmem:[%s363 + $0x3c] sm:$0xf]
    %v380 = vld [vmem:[#allocation7 + $0x2] sm:$0x1]
    %v381 = vperm.slane %v380, 0
    %v398 = vunpack.c.l.b16 %v364
    %v399 = vunpack.c.l.b16 %v365
    %v400 = vunpack.c.l.b16 %v366
    %v401 = vunpack.c.l.b16 %v367
    %v402 = vunpack.c.l.b16 %v368
    %v403 = vunpack.c.l.b16 %v369
    %v404 = vunpack.c.l.b16 %v370
    %v405 = vunpack.c.l.b16 %v371
    %v406 = vunpack.c.l.b16 %v372
    %v407 = vunpack.c.l.b16 %v373
    %v408 = vunpack.c.l.b16 %v374
    %v409 = vunpack.c.l.b16 %v375
    %v410 = vunpack.c.l.b16 %v376
    %v411 = vunpack.c.l.b16 %v377
    %v412 = vunpack.c.l.b16 %v378
    %v413 = vunpack.c.l.b16 %v379
    %v414 = vpack.c.b16 %v399, %v398
    %v415 = vpack.c.b16 %v401, %v400
    %v416 = vpack.c.b16 %v403, %v402
    %v417 = vpack.c.b16 %v405, %v404
    %v418 = vpack.c.b16 %v407, %v406
    %v419 = vpack.c.b16 %v409, %v408
    %v420 = vpack.c.b16 %v411, %v410
    %v421 = vpack.c.b16 %v413, %v412
    %430 = vmatpush.bf16.msra.mxu0 %v421
    %431 = vmatpush.bf16.msra.mxu0 %v420
    %432 = vmatpush.bf16.msra.mxu0 %v419
    %433 = vmatpush.bf16.msra.mxu0 %v418
    %434 = vmatpush.bf16.msra.mxu0 %v417
    %435 = vmatpush.bf16.msra.mxu0 %v416
    %436 = vmatpush.bf16.msra.mxu0 %v415
    %437 = vmatpush.bf16.msra.mxu0 %v414
    %438 = vmatmul.bf16.gmra.mxu0 %v355
    %v439 = vpop.f32.mrf.mxu0
    %v440 = vadd.f32 %v381, %v439
    %v441 = vpop.f32.mrf.mxu0
    %v442 = vadd.f32 %v381, %v441
    %443 = vmatmul.bf16.gmra.mxu0 %v356
    %v444 = vpop.f32.mrf.mxu0
    %v445 = vadd.f32 %v381, %v444
    %v446 = vpop.f32.mrf.mxu0
    %v447 = vadd.f32 %v381, %v446
    %448 = vmatmul.bf16.gmra.mxu0 %v357
    %v449 = vpop.f32.mrf.mxu0
    %v450 = vadd.f32 %v381, %v449
    %v451 = vpop.f32.mrf.mxu0
    %v452 = vadd.f32 %v381, %v451
    %453 = vmatmul.bf16.gmra.mxu0 %v358
    %v454 = vpop.f32.mrf.mxu0
    %v455 = vadd.f32 %v381, %v454
    %v456 = vpop.f32.mrf.mxu0
    %v457 = vadd.f32 %v381, %v456
    %458 = vmatmul.bf16.gmra.mxu0 %v359
    %v459 = vpop.f32.mrf.mxu0
    %v460 = vadd.f32 %v381, %v459
    %v461 = vpop.f32.mrf.mxu0
    %v462 = vadd.f32 %v381, %v461
    %463 = vmatmul.bf16.gmra.mxu0 %v360
    %v464 = vpop.f32.mrf.mxu0
    %v465 = vadd.f32 %v381, %v464
    %v466 = vpop.f32.mrf.mxu0
    %v467 = vadd.f32 %v381, %v466
    %468 = vmatmul.bf16.gmra.mxu0 %v361
    %v469 = vpop.f32.mrf.mxu0
    %v470 = vadd.f32 %v381, %v469
    %v471 = vpop.f32.mrf.mxu0
    %v472 = vadd.f32 %v381, %v471
    %473 = vmatmul.bf16.gmra.mxu0 %v362
    %v474 = vpop.f32.mrf.mxu0
    %v475 = vadd.f32 %v381, %v474
    %v476 = vpop.f32.mrf.mxu0
    %v477 = vadd.f32 %v381, %v476
    %478 = vdwg.mxu0
    %v479 = vmax.f32 %v440, 0.0
    %v480 = vmax.f32 %v442, 0.0
    %v481 = vmax.f32 %v445, 0.0
    %v482 = vmax.f32 %v447, 0.0
    %v483 = vmax.f32 %v450, 0.0
    %v484 = vmax.f32 %v452, 0.0
    %v485 = vmax.f32 %v455, 0.0
    %v486 = vmax.f32 %v457, 0.0
    %v487 = vmax.f32 %v460, 0.0
    %v488 = vmax.f32 %v462, 0.0
    %v489 = vmax.f32 %v465, 0.0
    %v490 = vmax.f32 %v467, 0.0
    %v491 = vmax.f32 %v470, 0.0
    %v492 = vmax.f32 %v472, 0.0
    %v493 = vmax.f32 %v475, 0.0
    %v494 = vmax.f32 %v477, 0.0
    %v495 = vpack.c.bf16 %v479, %v479
    %v496 = vpack.c.bf16 %v480, %v480
    %v497 = vpack.c.bf16 %v481, %v481
    %v498 = vpack.c.bf16 %v482, %v482
    %v499 = vpack.c.bf16 %v483, %v483
    %v500 = vpack.c.bf16 %v484, %v484
    %v501 = vpack.c.bf16 %v485, %v485
    %v502 = vpack.c.bf16 %v486, %v486
    %v503 = vpack.c.bf16 %v487, %v487
    %v504 = vpack.c.bf16 %v488, %v488
    %v505 = vpack.c.bf16 %v489, %v489
    %v506 = vpack.c.bf16 %v490, %v490
    %v507 = vpack.c.bf16 %v491, %v491
    %v508 = vpack.c.bf16 %v492, %v492
    %v509 = vpack.c.bf16 %v493, %v493
    %v510 = vpack.c.bf16 %v494, %v494
    %v511 = vunpack.c.l.bf16 %v495
    %v512 = vunpack.c.l.bf16 %v496
    %v513 = vunpack.c.l.bf16 %v497
    %v514 = vunpack.c.l.bf16 %v498
    %v515 = vunpack.c.l.bf16 %v499
    %v516 = vunpack.c.l.bf16 %v500
    %v517 = vunpack.c.l.bf16 %v501
    %v518 = vunpack.c.l.bf16 %v502
    %v519 = vunpack.c.l.bf16 %v503
    %v520 = vunpack.c.l.bf16 %v504
    %v521 = vunpack.c.l.bf16 %v505
    %v522 = vunpack.c.l.bf16 %v506
    %v523 = vunpack.c.l.bf16 %v507
    %v524 = vunpack.c.l.bf16 %v508
    %v525 = vunpack.c.l.bf16 %v509
    %v526 = vunpack.c.l.bf16 %v510
    %527 = vst [vmem:[#allocation8] sm:$0xff] %v511
    %528 = vst [vmem:[#allocation8 + $0x8] sm:$0xff] %v512
    %529 = vst [vmem:[#allocation8 + $0x10] sm:$0xff] %v513
    %530 = vst [vmem:[#allocation8 + $0x18] sm:$0xff] %v514
    %531 = vst [vmem:[#allocation8 + $0x20] sm:$0xff] %v515
    %532 = vst [vmem:[#allocation8 + $0x28] sm:$0xff] %v516
    %533 = vst [vmem:[#allocation8 + $0x30] sm:$0xff] %v517
    %534 = vst [vmem:[#allocation8 + $0x38] sm:$0xff] %v518
    %535 = vst [vmem:[#allocation8 + $0x40] sm:$0xff] %v519
    %536 = vst [vmem:[#allocation8 + $0x48] sm:$0xff] %v520
    %537 = vst [vmem:[#allocation8 + $0x50] sm:$0xff] %v521
    %538 = vst [vmem:[#allocation8 + $0x58] sm:$0xff] %v522
    %539 = vst [vmem:[#allocation8 + $0x60] sm:$0xff] %v523
    %540 = vst [vmem:[#allocation8 + $0x68] sm:$0xff] %v524
    %541 = vst [vmem:[#allocation8 + $0x70] sm:$0xff] %v525
    %542 = vst [vmem:[#allocation8 + $0x78] sm:$0xff] %v526
    // Predicated region
    $region26: #{tpu_custom_call.1} parent=1 // pred_check
      _
    $region27: #{tpu_custom_call.1} parent=1 // pred_check_branch
      %544 = sbr.rel (0) target = $region29
    $region28: #{tpu_custom_call.1} parent=1 // pred_region
      %546 = vsyncadd [#allocation4], 0
      %s547 = sshll.u32 [#allocation8], 4
      %s548 = int_to_ptr.vmem [resolvable:$true] %s547
      %s549 = sshll.u32 %s3, 4
      %s550 = int_to_ptr.hbm [resolvable:$true] %s549
      %555 = dma.vmem_to_hbm [thread:$0]  %s548, 2048, %s550, [#allocation4], 128, 128, 8
    $region29: #{tpu_custom_call.1} parent=1 // pred_fallthru
      _
    // Predicated region
    $region30: #{tpu_custom_call.1} parent=1 // pred_check
      _
    $region31: #{tpu_custom_call.1} parent=1 // pred_check_branch
      %557 = sbr.rel (0) target = $region33
    $region32: #{tpu_custom_call.1} parent=1 // pred_region
      %559 = dma.done [#allocation4], 2048
    $region33: #{tpu_custom_call.1} parent=1 // pred_fallthru
      _
    %560 = vsyncpa [#allocation3], 1
    %561 = vsyncpa [#allocation6], 1
    %562 = vsyncpa [#allocation4], 1

</llo_original>
